<compile_context>
chip_gen: v6e
topology: v6e:2x2x1
jax: 0.10.0
libtpu: 0.0.40
codegen_flags: <defaults>
</compile_context>

<pallas_src>
import functools

import jax
import jax.numpy as jnp
from jax import lax
from jax.experimental import pallas as pl
from jax.experimental.pallas import tpu as pltpu


def _vmem_capacity_bytes():
    """Physical VMEM per TensorCore; conservative fallback if unknown."""
    try:
        cap = getattr(pltpu.get_tpu_info(), "vmem_capacity_bytes", None)
        if cap:
            return int(cap)
    except Exception:
        pass
    return 64 * 1024 * 1024  # v7x per-TC figure: safe lower bound everywhere


def _gem_kernel(x_ref, o_ref, *, p, eps, hw, int_p):
    """Single-pass kernel: one full H*W row slab per grid step."""
    x = x_ref[...]                                         # (TR, hw)
    x = jnp.maximum(x, jnp.asarray(eps, x.dtype))          # clamp(min=eps)
    if int_p is not None:
        xp = lax.integer_pow(x, int_p)                     # VPU multiplies (p=3)
    else:
        xp = x ** jnp.asarray(p, x.dtype)                  # EUP path, native dtype
    s = jnp.sum(xp, axis=-1, dtype=jnp.float32)            # (TR,) f32 accumulation
    m = s * jnp.float32(1.0 / hw)                          # mean over H*W
    r = m ** jnp.float32(1.0 / p)                          # one transcendental/row
    o_ref[...] = jnp.broadcast_to(r.astype(o_ref.dtype), o_ref.shape)


def _gem_kernel_split(x_ref, o_ref, acc_ref, *, p, eps, hw, thw, int_p, mask_tail):
    """Two-axis kernel: spatial axis split; f32 accumulator in scratch (P3)."""
    k = pl.program_id(1)

    @pl.when(k == 0)
    def _():
        acc_ref[...] = jnp.zeros_like(acc_ref)

    x = x_ref[...]                                         # (TR, thw)
    x = jnp.maximum(x, jnp.asarray(eps, x.dtype))
    if int_p is not None:
        xp = lax.integer_pow(x, int_p)
    else:
        xp = x ** jnp.asarray(p, x.dtype)
    if mask_tail:
        col = lax.broadcasted_iota(jnp.int32, xp.shape, 1) + k * thw
        xp = jnp.where(col < hw, xp, jnp.asarray(0, xp.dtype))
    acc_ref[...] += jnp.sum(xp, axis=-1, dtype=jnp.float32)[None, :]

    @pl.when(k == pl.num_programs(1) - 1)
    def _():
        m = acc_ref[...] * jnp.float32(1.0 / hw)           # (1, TR)
        r = m ** jnp.float32(1.0 / p)
        o_ref[...] = jnp.broadcast_to(r.astype(o_ref.dtype), o_ref.shape)


def gem_pallas(x, p=3.0, eps=1e-6, *, max_tile_bytes=None):
    """GeM pooling. x: (B, C, H, W) -> (B, C, 1, 1)."""
    B, C, H, W = x.shape
    rows = B * C
    hw = H * W
    dtype = x.dtype
    itemsize = jnp.dtype(dtype).itemsize
    x2d = x.reshape(rows, hw)

    sublane = max(8, 32 // max(itemsize, 1))     # 8 f32, 16 bf16, 32 int8/fp8
    hw_pad = pl.cdiv(hw, 128) * 128              # lane-padded row width in VMEM
    row_bytes = hw_pad * itemsize

    cap = _vmem_capacity_bytes()
    budget = (max(2 * 1024 * 1024, cap // 8)
              if max_tile_bytes is None else int(max_tile_bytes))
    vmem_limit = cap // 2

    rows_rounded = pl.cdiv(rows, sublane) * sublane

    p_f = float(p)
    eps_f = float(eps)
    int_p = int(p_f) if (p_f == round(p_f) and 0 < p_f <= 16) else None

    out_sub = sublane
    split_hw = row_bytes * sublane > budget      # even a minimal row slab too big?

    if not split_hw:
        tr = max(sublane, (budget // row_bytes) // sublane * sublane)
        tr = min(tr, rows_rounded)
        # Keep >= 2 row tiles when possible so both v7x TensorCores get work.
        half = (rows_rounded // 2) // sublane * sublane
        if half >= sublane:
            tr = min(tr, half)
        num_tiles = pl.cdiv(rows, tr)
        kernel = functools.partial(_gem_kernel, p=p_f, eps=eps_f, hw=hw, int_p=int_p)
        grid = (num_tiles,)
        in_specs = [pl.BlockSpec((tr, hw), lambda i: (i, 0))]
        out_specs = pl.BlockSpec((1, out_sub, tr), lambda i: (i, 0, 0))
        scratch = []
        dims = ("parallel",)
    else:
        tr = sublane
        thw = max(128, (budget // (tr * itemsize)) // 128 * 128)
        thw = min(thw, hw_pad)
        num_tiles = pl.cdiv(rows, tr)
        n_hw = pl.cdiv(hw, thw)
        mask_tail = (hw % thw) != 0
        kernel = functools.partial(_gem_kernel_split, p=p_f, eps=eps_f, hw=hw,
                                   thw=thw, int_p=int_p, mask_tail=mask_tail)
        grid = (num_tiles, n_hw)
        in_specs = [pl.BlockSpec((tr, thw), lambda i, k: (i, k))]
        out_specs = pl.BlockSpec((1, out_sub, tr), lambda i, k: (i, 0, 0))
        scratch = [pltpu.VMEM((1, tr), jnp.float32)]
        dims = ("parallel", "arbitrary")

    cost = pl.CostEstimate(
        flops=4 * rows * hw,
        transcendentals=(rows if int_p is not None else rows * (2 * hw + 1)),
        bytes_accessed=rows * hw * itemsize + num_tiles * out_sub * tr * itemsize,
    )

    out3d = pl.pallas_call(
        kernel,
        out_shape=jax.ShapeDtypeStruct((num_tiles, out_sub, tr), dtype),
        grid_spec=pltpu.PrefetchScalarGridSpec(
            num_scalar_prefetch=0,
            grid=grid,
            in_specs=in_specs,
            out_specs=out_specs,
            scratch_shapes=scratch,
        ),
        compiler_params=pltpu.CompilerParams(
            dimension_semantics=dims,
            vmem_limit_bytes=vmem_limit,
        ),
        cost_estimate=cost,
    )(x2d)

    # Take sublane 0 of each lane-dense output block, drop padded rows.
    return out3d[:, 0, :].reshape(num_tiles * tr)[:rows].reshape(B, C, 1, 1)


def gem_ref(x, p=3.0, eps=1e-6):
    """Pure-JAX reference matching the PyTorch forward."""
    xc = jnp.maximum(x, eps)
    return jnp.mean(xc ** p, axis=(-2, -1), keepdims=True) ** (1.0 / p)


if __name__ == "__main__":
    p, eps = 3.0, 1e-6   # GeM module defaults (p not trainable)

    # Primary module-sized case: (B, C, H, W) = (2, 4, 16, 16).
    x = jax.random.uniform(jax.random.PRNGKey(0), (2, 4, 16, 16), dtype=jnp.float32)
    out = jax.block_until_ready(gem_pallas(x, p=p, eps=eps))
    ref = gem_ref(x, p=p, eps=eps)
    assert out.shape == (2, 4, 1, 1), out.shape
    assert jnp.allclose(out, ref, atol=1e-5, rtol=1e-5)

    # Ragged rows + multi-tile grid (exercises pad-free edge-block masking).
    x2 = jax.random.uniform(jax.random.PRNGKey(1), (3, 5, 7, 7), dtype=jnp.float32)
    out2 = jax.block_until_ready(gem_pallas(x2, p=p, eps=eps))
    assert out2.shape == (3, 5, 1, 1)
    assert jnp.allclose(out2, gem_ref(x2, p=p, eps=eps), atol=1e-5, rtol=1e-5)

    # Spatial-split accumulator path (forced via a tiny tile budget).
    x3 = jax.random.uniform(jax.random.PRNGKey(2), (2, 4, 60, 60), dtype=jnp.float32)
    out3 = jax.block_until_ready(gem_pallas(x3, p=p, eps=eps, max_tile_bytes=64 * 1024))
    assert out3.shape == (2, 4, 1, 1)
    assert jnp.allclose(out3, gem_ref(x3, p=p, eps=eps), atol=1e-5, rtol=1e-5)

    print("KERNEL_OK")
</pallas_src>

<mosaic_0001>
module attributes {stable_mosaic.version = 11 : i64} {
  func.func @_gem_kernel(%arg0: i32, %arg1: memref<8x256xf32, #tpu.memory_space<vmem>>, %arg2: memref<1x8x8xf32, #tpu.memory_space<vmem>>) attributes {dimension_semantics = [#tpu.dimension_semantics<parallel>], iteration_bounds = array<i64: 1>, scalar_prefetch = 0 : i64, scratch_operands = 0 : i64, tpu.core_type = #tpu.core_type<tc>, window_params = [{transform_indices = @transform_0, window_bounds = array<i64: 8, 256>}, {transform_indices = @transform_1, window_bounds = array<i64: 1, 8, 8>}]} {
    %c0 = arith.constant 0 : index
    %c0_0 = arith.constant 0 : index
    %0 = vector.load %arg1[%c0, %c0_0] : memref<8x256xf32, #tpu.memory_space<vmem>>, vector<8x256xf32>
    %cst = arith.constant 9.99999997E-7 : f32
    %1 = vector.broadcast %cst : f32 to vector<8x256xf32>
    %2 = arith.maximumf %0, %1 : vector<8x256xf32>
    %3 = arith.mulf %2, %2 : vector<8x256xf32>
    %4 = arith.mulf %2, %3 : vector<8x256xf32>
    %cst_1 = arith.constant dense<0.000000e+00> : vector<8xf32>
    %5 = vector.multi_reduction <add>, %4, %cst_1 [1] : vector<8x256xf32> to vector<8xf32>
    %cst_2 = arith.constant 3.906250e-03 : f32
    %6 = vector.broadcast %cst_2 : f32 to vector<8xf32>
    %7 = arith.mulf %5, %6 : vector<8xf32>
    %cst_3 = arith.constant 0.333333343 : f32
    %8 = vector.broadcast %cst_3 : f32 to vector<8xf32>
    %9 = math.powf %7, %8 : vector<8xf32>
    %10 = vector.shape_cast %9 : vector<8xf32> to vector<1x1x8xf32>
    %11 = vector.broadcast %10 : vector<1x1x8xf32> to vector<1x8x8xf32>
    %c0_4 = arith.constant 0 : index
    %c0_5 = arith.constant 0 : index
    %c0_6 = arith.constant 0 : index
    %12 = vector.load %arg2[%c0_4, %c0_5, %c0_6] : memref<1x8x8xf32, #tpu.memory_space<vmem>>, vector<1x8x8xf32>
    tpu.vector_store %arg2[%c0_4, %c0_5, %c0_6], %11 {strides = array<i32>} : memref<1x8x8xf32, #tpu.memory_space<vmem>>, vector<1x8x8xf32>,
    return
  }
  func.func @transform_0(%arg0: i32) -> (i32, i32) {
    %c0_i32 = arith.constant 0 : i32
    %c0_i32_0 = arith.constant 0 : i32
    return %arg0, %c0_i32 : i32, i32
  }
  func.func @transform_1(%arg0: i32) -> (i32, i32, i32) {
    %c0_i32 = arith.constant 0 : i32
    %c0_i32_0 = arith.constant 0 : i32
    %c0_i32_1 = arith.constant 0 : i32
    return %arg0, %c0_i32, %c0_i32_0 : i32, i32, i32
  }
}

</mosaic_0001>

<llo_original>
// kernel: tpu_custom_call.1
$region0: #{tpu_custom_call.1}
  #allocation0 [shape = 'u32[]', space=smem, size = 0x4, offset = 0x4, fixed_abs, tag = 'smem constant byte address 0x4 - core index']
  #allocation1 [shape = 'u32[144,128]{1,0:T(1,128)}', space=vmem, size = 0x12000, scoped, tag = 'internal scratch']
  %s0 = inlined_call_operand.hbm [shape: f32[8,256], index: 0, kind: input, shape index: {}]
  %s1 = inlined_call_operand.hbm [shape: f32[1,8,8], index: 1, kind: output, shape index: {}]
  %s2 = sld [smem:[#allocation0]]
  $region18: #{tpu_custom_call.1} parent=0
    _
  %s4 = ssub.s32 1, %s2
  %s5 = scalar_select 0, %s4, %s2
  $region1: #{tpu_custom_call.1} parent=0
    #allocation2 [shape = 'u8[8192]{0}', space=vmem, size = 0x2000, scoped, tag = 'input window, operand 0, single buffered']
    #allocation3 [shape = 's32[1]{0}', space=sflag, size = 0x4, scoped, tag = 'scoped memory for tpu_custom_call.1']
    #allocation4 [shape = 's32[1]{0}', space=sflag, size = 0x4, scoped, tag = 'scoped memory for tpu_custom_call.1']
    #allocation5 [shape = 'u8[4096]{0}', space=vmem, size = 0x1000, scoped, tag = 'output window, operand 0, single buffered']
    %6 = vsyncpa [#allocation3], 0
    %7 = vsyncpa [#allocation4], 0
    // Predicated region
    $region2: #{tpu_custom_call.1} parent=1 // pred_check
      _
    $region3: #{tpu_custom_call.1} parent=1 // pred_check_branch
      %9 = sbr.rel (0) target = $region5
    $region4: #{tpu_custom_call.1} parent=1 // pred_region
      %s11 = ssub.s32 256, 256
      %12 = vsyncadd [#allocation3], %s11
      %s14 = sshll.u32 [#allocation2], 4
      %s15 = int_to_ptr.vmem [resolvable:$true] %s14
      %17 = dma.hbm_to_vmem [thread:$0]  %s0, 256, %s15, [#allocation3]
    $region5: #{tpu_custom_call.1} parent=1 // pred_fallthru
      _
    // Predicated region
    $region6: #{tpu_custom_call.1} parent=1 // pred_check
      _
    $region7: #{tpu_custom_call.1} parent=1 // pred_check_branch
      %19 = sbr.rel (0) target = $region9
    $region8: #{tpu_custom_call.1} parent=1 // pred_region
      %20 = dma.done [#allocation3], 256
    $region9: #{tpu_custom_call.1} parent=1 // pred_fallthru
      _
    %v21 = vld [vmem:[#allocation2] sm:$0xff]
    %v22 = vld [vmem:[#allocation2 + $0x8] sm:$0xff]
    %v23 = vmax.f32 %v21, 1e-06
    %v24 = vmax.f32 %v22, 1e-06
    %v25 = vmul.f32 %v23, %v23
    %v26 = vmul.f32 %v24, %v24
    %v27 = vmul.f32 %v23, %v25
    %v28 = vmul.f32 %v24, %v26
    %v29 = vadd.f32 %v27, %v28
    %30 = vadd.xlane.f32.xlu0 %v29
    %v31 = vpop.xlane.xlu0 %30
    %v32 = vmul.f32 %v31, 0.00390625
    %v33 = vpow.f32 %v32, 0.33333334
    %v35 = vlaneseq
    %v36 = vand.u32 %v35, 127
    %v37 = vlaneseq
    %v38 = vshrl.u32 %v37, 7
    %v39 = vsub.s32 %v36, %v38
    %v40 = vrot.slane %v33, %v39
    %vm41 = vcmask 1042434
    %v42 = vsel %vm41, %v40, %v40
    %vm43 = vcmask 1043459
    %v44 = vsel %vm43, %v40, %v42
    %vm45 = vcmask 1044484
    %v46 = vsel %vm45, %v40, %v44
    %vm47 = vcmask 1045509
    %v48 = vsel %vm47, %v40, %v46
    %vm49 = vcmask 1046534
    %v50 = vsel %vm49, %v40, %v48
    %vm51 = vcmask 1047559
    %v52 = vsel %vm51, %v40, %v50
    %vm54 = vcmask 64512
    %55 = vst.msk [vmem:[#allocation5] sm:$0xff] %vm54, %v52
    // Predicated region
    $region10: #{tpu_custom_call.1} parent=1 // pred_check
      _
    $region11: #{tpu_custom_call.1} parent=1 // pred_check_branch
      %57 = sbr.rel (0) target = $region13
    $region12: #{tpu_custom_call.1} parent=1 // pred_region
      %s59 = ssub.s32 128, 128
      %60 = vsyncadd [#allocation4], %s59
      %s62 = sshll.u32 [#allocation5], 4
      %s63 = int_to_ptr.vmem [resolvable:$true] %s62
      %65 = dma.vmem_to_hbm [thread:$0]  %s63, 128, %s1, [#allocation4]
    $region13: #{tpu_custom_call.1} parent=1 // pred_fallthru
      _
    // Predicated region
    $region14: #{tpu_custom_call.1} parent=1 // pred_check
      _
    $region15: #{tpu_custom_call.1} parent=1 // pred_check_branch
      %67 = sbr.rel (0) target = $region17
    $region16: #{tpu_custom_call.1} parent=1 // pred_region
      %68 = dma.done [#allocation4], 128
    $region17: #{tpu_custom_call.1} parent=1 // pred_fallthru
      _
    %69 = vsyncpa [#allocation3], 1
    %70 = vsyncpa [#allocation4], 1

</llo_original>
